<compile_context>
chip_gen: v7x
topology: tpu7x:2x2x1
jax: 0.10.0
libtpu: 0.0.40
codegen_flags: <defaults>
</compile_context>

<pallas_src>
import functools

import jax
import jax.numpy as jnp
from jax.experimental import pallas as pl
from jax.experimental.pallas import tpu as pltpu


def _embedding_kernel(x_ref, w_ref, b_ref, o_ref):
    # Linear: [tm, K] @ [K, Ep] + [1, Ep]   (Ep = lane-padded embed dim)
    y = jnp.dot(x_ref[...], w_ref[...], preferred_element_type=jnp.float32)
    y = y + b_ref[...]
    # TODO(synk): nn.Dropout(0.1) is identity in eval mode; training-mode
    # dropout would need pltpu.prng_seed + pltpu.prng_random_bits masking.
    o_ref[...] = y.astype(o_ref.dtype)


def _round_up(v, m):
    return (v + m - 1) // m * m


@functools.partial(jax.jit, static_argnames=("tm",))
def robot_state_vector_embedding(x, w, b, *, tm=256):
    """x: [..., K]; w: [K, E] (transposed vs PyTorch weight); b: [E]."""
    *lead, K = x.shape
    E = w.shape[1]
    M = 1
    for d in lead:
        M *= d
    x2d = x.reshape(M, K)

    # Lane-dense output (pad E to a multiple of 128) and row padding so the
    # grid divides evenly.  For small M this collapses to a single grid step.
    Ep = _round_up(E, 128)
    Mp = _round_up(M, 8)
    tm_eff = min(tm, Mp)
    Mp = _round_up(Mp, tm_eff)

    w_p = jnp.pad(w, ((0, 0), (0, Ep - E)))
    b_p = jnp.pad(b.reshape(1, E), ((0, 0), (0, Ep - E)))
    x_p = jnp.pad(x2d, ((0, Mp - M), (0, 0)))

    out = pl.pallas_call(
        _embedding_kernel,
        out_shape=jax.ShapeDtypeStruct((Mp, Ep), x.dtype),
        grid=(Mp // tm_eff,),
        in_specs=[
            pl.BlockSpec((tm_eff, K), lambda i: (i, 0)),   # x row tile
            pl.BlockSpec((K, Ep), lambda i: (0, 0)),       # W (whole, tiny)
            pl.BlockSpec((1, Ep), lambda i: (0, 0)),       # bias
        ],
        out_specs=pl.BlockSpec((tm_eff, Ep), lambda i: (i, 0)),
        compiler_params=pltpu.CompilerParams(
            dimension_semantics=("parallel",),
        ),
    )(x_p, w_p, b_p)

    return out[:M, :E].reshape(*lead, E)


def init_embedding_params(key, initial_dim, embed_dim, dtype=jnp.float32):
    """xavier_normal_ weight / zero bias, stored transposed as (in, out)."""
    std = (2.0 / (initial_dim + embed_dim)) ** 0.5
    w = (jax.random.normal(key, (initial_dim, embed_dim)) * std).astype(dtype)
    b = jnp.zeros((embed_dim,), dtype)
    return w, b


if __name__ == "__main__":
    initial_dim = 10
    embed_dim = 64
    batch, seq = 2, 8

    key = jax.random.PRNGKey(0)
    kx, kp = jax.random.split(key)

    x = jax.random.normal(kx, (batch, seq, initial_dim), dtype=jnp.float32)
    w, b = init_embedding_params(kp, initial_dim, embed_dim)

    y = robot_state_vector_embedding(x, w, b)
    jax.block_until_ready(y)

    # sanity check against pure-JAX reference (dropout identity in eval mode)
    y_ref = (x.reshape(-1, initial_dim) @ w + b).reshape(batch, seq, embed_dim)
    assert y.shape == (batch, seq, embed_dim)
    assert jnp.allclose(y, y_ref, atol=1e-5, rtol=1e-5), "mismatch vs reference"

    print("KERNEL_OK")
</pallas_src>

<mosaic_0001>
module attributes {stable_mosaic.version = 11 : i64} {
  func.func @_embedding_kernel(%arg0: i32, %arg1: memref<16x10xf32, #tpu.memory_space<vmem>>, %arg2: memref<10x128xf32, #tpu.memory_space<vmem>>, %arg3: memref<1x128xf32, #tpu.memory_space<vmem>>, %arg4: memref<16x128xf32, #tpu.memory_space<vmem>>) attributes {dimension_semantics = [#tpu.dimension_semantics<parallel>], iteration_bounds = array<i64: 1>, scalar_prefetch = 0 : i64, scratch_operands = 0 : i64, tpu.core_type = #tpu.core_type<tc>, window_params = [{transform_indices = @transform_0, window_bounds = array<i64: 16, 10>}, {pipeline_mode = #tpu.pipeline_mode<synchronous>, transform_indices = @transform_1, window_bounds = array<i64: 10, 128>}, {pipeline_mode = #tpu.pipeline_mode<synchronous>, transform_indices = @transform_2, window_bounds = array<i64: 1, 128>}, {transform_indices = @transform_3, window_bounds = array<i64: 16, 128>}]} {
    %c0 = arith.constant 0 : index
    %c0_0 = arith.constant 0 : index
    %0 = vector.load %arg1[%c0, %c0_0] : memref<16x10xf32, #tpu.memory_space<vmem>>, vector<16x10xf32>
    %c0_1 = arith.constant 0 : index
    %c0_2 = arith.constant 0 : index
    %1 = vector.load %arg2[%c0_1, %c0_2] : memref<10x128xf32, #tpu.memory_space<vmem>>, vector<10x128xf32>
    %cst = arith.constant dense<0.000000e+00> : vector<16x128xf32>
    %2 = tpu.matmul %0, %1, %cst {dimension_numbers = #tpu.dot_dimension_numbers<[1], [0], [0], [1], [0, 0, 1, 1], [], []>} : vector<16x10xf32>, vector<10x128xf32>, vector<16x128xf32> -> vector<16x128xf32>
    %c0_3 = arith.constant 0 : index
    %c0_4 = arith.constant 0 : index
    %3 = vector.load %arg3[%c0_3, %c0_4] : memref<1x128xf32, #tpu.memory_space<vmem>>, vector<1x128xf32>
    %4 = vector.broadcast %3 : vector<1x128xf32> to vector<16x128xf32>
    %5 = arith.addf %2, %4 : vector<16x128xf32>
    %c0_5 = arith.constant 0 : index
    %c0_6 = arith.constant 0 : index
    %6 = vector.load %arg4[%c0_5, %c0_6] : memref<16x128xf32, #tpu.memory_space<vmem>>, vector<16x128xf32>
    tpu.vector_store %arg4[%c0_5, %c0_6], %5 {strides = array<i32>} : memref<16x128xf32, #tpu.memory_space<vmem>>, vector<16x128xf32>,
    return
  }
  func.func @transform_0(%arg0: i32) -> (i32, i32) {
    %c0_i32 = arith.constant 0 : i32
    %c0_i32_0 = arith.constant 0 : i32
    return %arg0, %c0_i32 : i32, i32
  }
  func.func @transform_1(%arg0: i32) -> (i32, i32) {
    %c0_i32 = arith.constant 0 : i32
    %c0_i32_0 = arith.constant 0 : i32
    %c0_i32_1 = arith.constant 0 : i32
    return %c0_i32, %c0_i32_0 : i32, i32
  }
  func.func @transform_2(%arg0: i32) -> (i32, i32) {
    %c0_i32 = arith.constant 0 : i32
    %c0_i32_0 = arith.constant 0 : i32
    %c0_i32_1 = arith.constant 0 : i32
    return %c0_i32, %c0_i32_0 : i32, i32
  }
  func.func @transform_3(%arg0: i32) -> (i32, i32) {
    %c0_i32 = arith.constant 0 : i32
    %c0_i32_0 = arith.constant 0 : i32
    return %arg0, %c0_i32 : i32, i32
  }
}

</mosaic_0001>

<llo_original>
// kernel: robot_state_vector_embedding.1
$region0: #{robot_state_vector_embedding.1}
  #allocation0 [shape = 'u32[]', space=smem, size = 0x4, offset = 0x4, fixed_abs, tag = 'smem constant byte address 0x4 - core index']
  #allocation1 [shape = 'u32[144,128]{1,0:T(1,128)}', space=vmem, size = 0x12000, scoped, tag = 'internal scratch']
  %s0 = inlined_call_operand.vmem [shape: f32[16,10], index: 0, kind: input, shape index: {}]
  %s1 = inlined_call_operand.vmem [shape: f32[10,128], index: 1, kind: input, shape index: {}]
  %s2 = inlined_call_operand.vmem [shape: f32[1,128], index: 2, kind: input, shape index: {}]
  %s3 = inlined_call_operand.vmem [shape: f32[16,128], index: 3, kind: output, shape index: {}]
  %s4 = sld [smem:[#allocation0]]
  $region22: #{robot_state_vector_embedding.1} parent=0
    _
  %s6 = ssub.s32 1, %s4
  %s7 = scalar_select 0, %s6, %s4
  // Predicated region
  $region2: #{robot_state_vector_embedding.1} parent=0 // pred_check
    _
  $region3: #{robot_state_vector_embedding.1} parent=0 // pred_check_branch
    %9 = sbr.rel (0) target = $region5
  $region4: #{robot_state_vector_embedding.1} parent=0 // pred_region
    _
  $region5: #{robot_state_vector_embedding.1} parent=0 // pred_fallthru
    _
  // Predicated region
  $region6: #{robot_state_vector_embedding.1} parent=0 // pred_check
    _
  $region7: #{robot_state_vector_embedding.1} parent=0 // pred_check_branch
    %11 = sbr.rel (0) target = $region9
  $region8: #{robot_state_vector_embedding.1} parent=0 // pred_region
    _
  $region9: #{robot_state_vector_embedding.1} parent=0 // pred_fallthru
    _
  // Predicated region
  $region10: #{robot_state_vector_embedding.1} parent=0 // pred_check
    _
  $region11: #{robot_state_vector_embedding.1} parent=0 // pred_check_branch
    %13 = sbr.rel (0) target = $region13
  $region12: #{robot_state_vector_embedding.1} parent=0 // pred_region
    _
  $region13: #{robot_state_vector_embedding.1} parent=0 // pred_fallthru
    _
  %v14 = vld [vmem:[%s0] sm:$0xff]
  %v15 = vld [vmem:[%s0 + $0x8] sm:$0xff]
  %v16 = vld [vmem:[%s1] sm:$0xff]
  %v17 = vld [vmem:[%s1 + $0x8] sm:$0x3]
  %v18 = vld [vmem:[%s2] sm:$0x1]
  %v20 = vlaneseq
  %v21 = vshrl.u32 %v20, 7
  %v22 = vsub.s32 0, %v21
  %v23 = vrot.slane %v18, %v22
  %vm25 = vcmask 80896
  %v27 = vsel %vm25, %v14, 0
  %v30 = vsel %vm25, %v15, 0
  %vm32 = vcmask 1041408
  %v34 = vsel %vm32, %v17, 0
  %36 = vmatprep.subr.mxu0 0.0
  %37 = vmatpush1.msra.mxu0 %v16
  %38 = vmatprep.subr.mxu0 0.0
  %39 = vmatpush1.msra.mxu0 %v34
  %40 = vmatprep.subr.mxu0 0.0
  %41 = vmatpush1.msra.mxu0 0.0
  %42 = vmatprep.subr.mxu0 0.0
  %43 = vmatpush1.msra.mxu0 0.0
  %44 = vmatprep.subr.mxu0 0.0
  %45 = vmatpush1.msra.mxu0 0.0
  %46 = vmatprep.subr.mxu0 0.0
  %47 = vmatpush1.msra.mxu0 0.0
  %48 = vmatprep.subr.mxu0 0.0
  %49 = vmatpush1.msra.mxu0 0.0
  %50 = vmatprep.subr.mxu0 0.0
  %51 = vmatpush1.msra.mxu0 0.0
  %52 = vmatprep.subr.mxu0 0.0
  %53 = vmatpush1.msra.mxu0 0.0
  %54 = vmatprep.subr.mxu0 0.0
  %55 = vmatpush1.msra.mxu0 0.0
  %56 = vmatprep.subr.mxu0 0.0
  %57 = vmatpush1.msra.mxu0 0.0
  %58 = vmatprep.subr.mxu0 0.0
  %59 = vmatpush1.msra.mxu0 0.0
  %60 = vmatprep.subr.mxu0 0.0
  %61 = vmatpush1.msra.mxu0 0.0
  %62 = vmatprep.subr.mxu0 0.0
  %63 = vmatpush1.msra.mxu0 0.0
  %64 = vmatprep.subr.mxu0 0.0
  %65 = vmatpush1.msra.mxu0 0.0
  %66 = vmatprep.subr.mxu0 0.0
  %67 = vmatpush1.msra.mxu0 0.0
  %68 = vmatprep.subr.mxu0 0.0
  %69 = vmatpush1.msra.mxu0 0.0
  %70 = vmatprep.subr.mxu0 0.0
  %71 = vmatpush1.msra.mxu0 0.0
  %72 = vmatprep.subr.mxu0 0.0
  %73 = vmatpush1.msra.mxu0 0.0
  %74 = vmatprep.subr.mxu0 0.0
  %75 = vmatpush1.msra.mxu0 0.0
  %76 = vmatprep.subr.mxu0 0.0
  %77 = vmatpush1.msra.mxu0 0.0
  %78 = vmatprep.subr.mxu0 0.0
  %79 = vmatpush1.msra.mxu0 0.0
  %80 = vmatprep.subr.mxu0 0.0
  %81 = vmatpush1.msra.mxu0 0.0
  %82 = vmatprep.subr.mxu0 0.0
  %83 = vmatpush1.msra.mxu0 0.0
  %84 = vmatprep.subr.mxu0 0.0
  %85 = vmatpush1.msra.mxu0 0.0
  %86 = vmatprep.subr.mxu0 0.0
  %87 = vmatpush1.msra.mxu0 0.0
  %88 = vmatprep.subr.mxu0 0.0
  %89 = vmatpush1.msra.mxu0 0.0
  %90 = vmatprep.subr.mxu0 0.0
  %91 = vmatpush1.msra.mxu0 0.0
  %92 = vmatprep.subr.mxu0 0.0
  %93 = vmatpush1.msra.mxu0 0.0
  %94 = vmatprep.subr.mxu0 0.0
  %95 = vmatpush1.msra.mxu0 0.0
  %96 = vmatprep.subr.mxu0 0.0
  %97 = vmatpush1.msra.mxu0 0.0
  %98 = vmatprep.subr.mxu0 0.0
  %99 = vmatpush1.msra.mxu0 0.0
  %100 = vmatprep.mubr.f32.mxu0 0.0
  %101 = vmatmul.mubr.f32.gmra.mrb[0].mxu0 %v27
  %v102 = vpop.f32.mrb[0].mxu0
  %v103 = vadd.f32 %v23, %v102
  %v104 = vpop.f32.mrb[0].mxu0
  %105 = vmatprep.mubr.f32.mxu0 0.0
  %106 = vmatmul.mubr.f32.gmra.mrb[0].mxu0 %v30
  %v107 = vpop.f32.mrb[0].mxu0
  %v108 = vadd.f32 %v23, %v107
  %v109 = vpop.f32.mrb[0].mxu0
  %110 = vdwg.mxu0
  %111 = vst [vmem:[%s3] sm:$0xff] %v103
  %112 = vst [vmem:[%s3 + $0x8] sm:$0xff] %v108
  // Predicated region
  $region14: #{robot_state_vector_embedding.1} parent=0 // pred_check
    _
  $region15: #{robot_state_vector_embedding.1} parent=0 // pred_check_branch
    %114 = sbr.rel (0) target = $region17
  $region16: #{robot_state_vector_embedding.1} parent=0 // pred_region
    _
  $region17: #{robot_state_vector_embedding.1} parent=0 // pred_fallthru
    _
  // Predicated region
  $region18: #{robot_state_vector_embedding.1} parent=0 // pred_check
    _
  $region19: #{robot_state_vector_embedding.1} parent=0 // pred_check_branch
    %116 = sbr.rel (0) target = $region21
  $region20: #{robot_state_vector_embedding.1} parent=0 // pred_region
    _
  $region21: #{robot_state_vector_embedding.1} parent=0 // pred_fallthru
    _

</llo_original>
